<compile_context>
chip_gen: v5e
topology: v5e:2x2
jax: 0.10.0
libtpu: 0.0.40
codegen_flags: <defaults>
</compile_context>

<pallas_src>
import functools

import jax
import jax.numpy as jnp
from jax import lax
from jax.experimental import pallas as pl
from jax.experimental.pallas import tpu as pltpu

LANE = 128          # lane width / padded feature width for every layer
_EPS = 1e-5         # nn.BatchNorm1d default eps
_SLOPE = 0.01       # LeakyReLU negative slope


def _round_up(n, m):
    return ((n + m - 1) // m) * m


def _bn_lrelu(h, gamma, beta):
    """Train-mode BatchNorm1d (batch mean / biased batch var) + LeakyReLU."""
    mu = jnp.mean(h, axis=0, keepdims=True)
    c = h - mu                                      # centered once, reused
    var = jnp.mean(c * c, axis=0, keepdims=True)    # biased variance
    y = c * lax.rsqrt(var + _EPS) * gamma + beta    # rsqrt -> EUP slot
    return jnp.where(y > 0, y, _SLOPE * y)


def _dqn_kernel(x_ref, p_ref, out_ref, *, s_pad):
    """Whole forward pass; x (B, s_pad), params one (R, 128) blob, out (B, 128)."""
    x = x_ref[...]                                  # (B, s_pad)

    # Static row-slices into the packed parameter blob (all 8-row aligned).
    o1 = 0
    o2 = o1 + s_pad
    o3 = o2 + LANE
    o4 = o3 + LANE
    ov = o4 + LANE
    w1 = p_ref[o1:o2, :]                            # (s_pad, 128)
    w2 = p_ref[o2:o3, :]                            # (128, 128)
    w3 = p_ref[o3:o4, :]                            # (128, 128)
    w4 = p_ref[o4:ov, :]                            # (128, 128)
    vec = p_ref[ov:ov + 8, :]                       # g1,be1,g2,be2,g3,be3,b4,pad
    g1, be1 = vec[0:1, :], vec[1:2, :]
    g2, be2 = vec[2:3, :], vec[3:4, :]
    g3, be3 = vec[4:5, :], vec[5:6, :]
    b4 = vec[6:7, :]

    # Layer 1: Linear -> BN -> LeakyReLU -> (Dropout = identity).
    # b1/b2/b3 omitted: cancelled exactly by the BN batch-mean subtraction.
    h = jnp.dot(x, w1, preferred_element_type=jnp.float32)
    h = _bn_lrelu(h, g1, be1)
    # Layer 2: Linear -> BN -> LeakyReLU -> (Dropout = identity).
    h = jnp.dot(h, w2, preferred_element_type=jnp.float32)
    h = _bn_lrelu(h, g2, be2)
    # Layer 3: Linear -> BN -> LeakyReLU.
    h = jnp.dot(h, w3, preferred_element_type=jnp.float32)
    h = _bn_lrelu(h, g3, be3)
    # Output head: Linear -> Q-values (lane-dense (B, 128) store).
    out_ref[...] = jnp.dot(h, w4, preferred_element_type=jnp.float32) + b4


def pack_params(params, state_size):
    """Coalesce all parameters into one lane-padded (R, 128) f32 blob."""
    s_pad = _round_up(state_size, 8)

    def pad_w(w, rows):
        out = jnp.zeros((rows, LANE), jnp.float32)
        return out.at[: w.shape[0], : w.shape[1]].set(w.astype(jnp.float32))

    def pad_v(v):
        v = v.reshape(1, -1).astype(jnp.float32)
        out = jnp.zeros((1, LANE), jnp.float32)
        return out.at[:, : v.shape[1]].set(v)

    blocks = [
        pad_w(params["w1"], s_pad),
        pad_w(params["w2"], LANE),
        pad_w(params["w3"], LANE),
        pad_w(params["w4"], LANE),
        pad_v(params["g1"]), pad_v(params["be1"]),
        pad_v(params["g2"]), pad_v(params["be2"]),
        pad_v(params["g3"]), pad_v(params["be3"]),
        pad_v(params["b4"]),
        jnp.zeros((1, LANE), jnp.float32),          # pad vector tile to 8 rows
    ]
    return jnp.concatenate(blocks, axis=0)          # (s_pad + 3*128 + 8, 128)


def dqn_forward(x, param_blob, state_size, action_size):
    """Run the online-network forward over a whole batch in one pallas_call."""
    B = x.shape[0]
    s_pad = _round_up(state_size, 8)
    if x.shape[1] != s_pad:
        x = jnp.pad(x, ((0, 0), (0, s_pad - x.shape[1])))

    vmem = pl.BlockSpec(memory_space=pltpu.MemorySpace.VMEM)
    cost = pl.CostEstimate(
        flops=2 * B * (s_pad * LANE + 3 * LANE * LANE),
        transcendentals=3 * LANE,                   # one rsqrt per feature per BN
        bytes_accessed=4 * (x.size + param_blob.size + B * LANE),
    )
    q_pad = pl.pallas_call(
        functools.partial(_dqn_kernel, s_pad=s_pad),
        out_shape=jax.ShapeDtypeStruct((B, LANE), jnp.float32),
        in_specs=[vmem, vmem],
        out_specs=vmem,
        cost_estimate=cost,
    )(x, param_blob)
    return q_pad[:, :action_size]


def init_params(key, state_size, hidden_size, action_size):
    """Deterministic synthetic parameters (shapes match the PyTorch module)."""
    h2 = hidden_size // 2
    ks = jax.random.split(key, 8)

    def lin(kw, kb, fan_in, fan_out):
        bound = 1.0 / jnp.sqrt(fan_in)
        w = jax.random.uniform(kw, (fan_in, fan_out), jnp.float32, -bound, bound)
        b = jax.random.uniform(kb, (1, fan_out), jnp.float32, -bound, bound)
        return w, b

    w1, b1 = lin(ks[0], ks[1], state_size, hidden_size)
    w2, b2 = lin(ks[2], ks[3], hidden_size, hidden_size)
    w3, b3 = lin(ks[4], ks[5], hidden_size, h2)
    w4, b4 = lin(ks[6], ks[7], h2, action_size)

    return {
        "w1": w1, "b1": b1,
        "g1": jnp.ones((1, hidden_size), jnp.float32),
        "be1": jnp.zeros((1, hidden_size), jnp.float32),
        "w2": w2, "b2": b2,
        "g2": jnp.ones((1, hidden_size), jnp.float32),
        "be2": jnp.zeros((1, hidden_size), jnp.float32),
        "w3": w3, "b3": b3,
        "g3": jnp.ones((1, h2), jnp.float32),
        "be3": jnp.zeros((1, h2), jnp.float32),
        "w4": w4, "b4": b4,
    }


def dqn_forward_reference(x, p):
    """Pure-JAX reference, faithful to the PyTorch module (biases included)."""
    def bn_lrelu(h, g, be):
        mu = jnp.mean(h, axis=0, keepdims=True)
        var = jnp.mean((h - mu) ** 2, axis=0, keepdims=True)
        y = (h - mu) / jnp.sqrt(var + _EPS) * g + be
        return jnp.where(y > 0, y, _SLOPE * y)

    h = bn_lrelu(x @ p["w1"] + p["b1"], p["g1"], p["be1"])
    h = bn_lrelu(h @ p["w2"] + p["b2"], p["g2"], p["be2"])
    h = bn_lrelu(h @ p["w3"] + p["b3"], p["g3"], p["be3"])
    return h @ p["w4"] + p["b4"]


if __name__ == "__main__":
    STATE_SIZE = 16
    HIDDEN_SIZE = 32
    ACTION_SIZE = 4
    BATCH = 128          # matches the agent's replay batch_size

    key = jax.random.PRNGKey(0)
    k_params, k_x = jax.random.split(key)
    params = init_params(k_params, STATE_SIZE, HIDDEN_SIZE, ACTION_SIZE)
    x = jax.random.normal(k_x, (BATCH, STATE_SIZE), jnp.float32)

    blob = pack_params(params, STATE_SIZE)          # packed once, reused per call
    q_values = dqn_forward(x, blob, STATE_SIZE, ACTION_SIZE)
    jax.block_until_ready(q_values)

    q_ref = dqn_forward_reference(x, params)
    assert q_values.shape == (BATCH, ACTION_SIZE)
    assert jnp.allclose(q_values, q_ref, atol=2e-4, rtol=2e-4)

    print("KERNEL_OK")
</pallas_src>

<mosaic_0001>
module attributes {stable_mosaic.version = 11 : i64} {
  func.func @_dqn_kernel(%arg0: memref<128x16xf32, #tpu.memory_space<vmem>>, %arg1: memref<408x128xf32, #tpu.memory_space<vmem>>, %arg2: memref<128x128xf32, #tpu.memory_space<vmem>>) attributes {dimension_semantics = [], scalar_prefetch = 0 : i64, scratch_operands = 0 : i64, tpu.core_type = #tpu.core_type<tc>} {
    %c0 = arith.constant 0 : index
    %c0_0 = arith.constant 0 : index
    %0 = vector.load %arg0[%c0, %c0_0] : memref<128x16xf32, #tpu.memory_space<vmem>>, vector<128x16xf32>
    %c0_1 = arith.constant 0 : index
    %c0_2 = arith.constant 0 : index
    %1 = vector.load %arg1[%c0_1, %c0_2] : memref<408x128xf32, #tpu.memory_space<vmem>>, vector<16x128xf32>
    %c16 = arith.constant 16 : index
    %c0_3 = arith.constant 0 : index
    %2 = vector.load %arg1[%c16, %c0_3] : memref<408x128xf32, #tpu.memory_space<vmem>>, vector<128x128xf32>
    %c144 = arith.constant 144 : index
    %c0_4 = arith.constant 0 : index
    %3 = vector.load %arg1[%c144, %c0_4] : memref<408x128xf32, #tpu.memory_space<vmem>>, vector<128x128xf32>
    %c272 = arith.constant 272 : index
    %c0_5 = arith.constant 0 : index
    %4 = vector.load %arg1[%c272, %c0_5] : memref<408x128xf32, #tpu.memory_space<vmem>>, vector<128x128xf32>
    %c400 = arith.constant 400 : index
    %c0_6 = arith.constant 0 : index
    %5 = vector.load %arg1[%c400, %c0_6] : memref<408x128xf32, #tpu.memory_space<vmem>>, vector<8x128xf32>
    %6 = vector.extract_strided_slice %5 {offsets = [0, 0], sizes = [1, 128], strides = [1, 1]} : vector<8x128xf32> to vector<1x128xf32>
    %7 = vector.extract_strided_slice %5 {offsets = [1, 0], sizes = [1, 128], strides = [1, 1]} : vector<8x128xf32> to vector<1x128xf32>
    %8 = vector.extract_strided_slice %5 {offsets = [2, 0], sizes = [1, 128], strides = [1, 1]} : vector<8x128xf32> to vector<1x128xf32>
    %9 = vector.extract_strided_slice %5 {offsets = [3, 0], sizes = [1, 128], strides = [1, 1]} : vector<8x128xf32> to vector<1x128xf32>
    %10 = vector.extract_strided_slice %5 {offsets = [4, 0], sizes = [1, 128], strides = [1, 1]} : vector<8x128xf32> to vector<1x128xf32>
    %11 = vector.extract_strided_slice %5 {offsets = [5, 0], sizes = [1, 128], strides = [1, 1]} : vector<8x128xf32> to vector<1x128xf32>
    %12 = vector.extract_strided_slice %5 {offsets = [6, 0], sizes = [1, 128], strides = [1, 1]} : vector<8x128xf32> to vector<1x128xf32>
    %cst = arith.constant dense<0.000000e+00> : vector<128x128xf32>
    %13 = tpu.matmul %0, %1, %cst {dimension_numbers = #tpu.dot_dimension_numbers<[1], [0], [0], [1], [0, 0, 1, 1], [], []>} : vector<128x16xf32>, vector<16x128xf32>, vector<128x128xf32> -> vector<128x128xf32>
    %cst_7 = arith.constant dense<0.000000e+00> : vector<128xf32>
    %14 = vector.multi_reduction <add>, %13, %cst_7 [0] : vector<128x128xf32> to vector<128xf32>
    %15 = vector.shape_cast %14 : vector<128xf32> to vector<1x128xf32>
    %cst_8 = arith.constant 1.280000e+02 : f32
    %16 = vector.broadcast %cst_8 : f32 to vector<1x128xf32>
    %17 = arith.divf %15, %16 : vector<1x128xf32>
    %18 = vector.broadcast %17 : vector<1x128xf32> to vector<128x128xf32>
    %19 = arith.subf %13, %18 : vector<128x128xf32>
    %20 = arith.mulf %19, %19 : vector<128x128xf32>
    %cst_9 = arith.constant dense<0.000000e+00> : vector<128xf32>
    %21 = vector.multi_reduction <add>, %20, %cst_9 [0] : vector<128x128xf32> to vector<128xf32>
    %22 = vector.shape_cast %21 : vector<128xf32> to vector<1x128xf32>
    %cst_10 = arith.constant 1.280000e+02 : f32
    %23 = vector.broadcast %cst_10 : f32 to vector<1x128xf32>
    %24 = arith.divf %22, %23 : vector<1x128xf32>
    %cst_11 = arith.constant 9.99999974E-6 : f32
    %25 = vector.broadcast %cst_11 : f32 to vector<1x128xf32>
    %26 = arith.addf %24, %25 : vector<1x128xf32>
    %27 = math.rsqrt %26 : vector<1x128xf32>
    %28 = vector.broadcast %27 : vector<1x128xf32> to vector<128x128xf32>
    %29 = arith.mulf %19, %28 : vector<128x128xf32>
    %30 = vector.broadcast %6 : vector<1x128xf32> to vector<128x128xf32>
    %31 = arith.mulf %29, %30 : vector<128x128xf32>
    %32 = vector.broadcast %7 : vector<1x128xf32> to vector<128x128xf32>
    %33 = arith.addf %31, %32 : vector<128x128xf32>
    %cst_12 = arith.constant 0.000000e+00 : f32
    %34 = vector.broadcast %cst_12 : f32 to vector<128x128xf32>
    %35 = arith.cmpf ogt, %33, %34 : vector<128x128xf32>
    %cst_13 = arith.constant 0.00999999977 : f32
    %36 = vector.broadcast %cst_13 : f32 to vector<128x128xf32>
    %37 = arith.mulf %36, %33 : vector<128x128xf32>
    %38 = arith.select %35, %33, %37 : vector<128x128xi1>, vector<128x128xf32>
    %cst_14 = arith.constant dense<0.000000e+00> : vector<128x128xf32>
    %39 = tpu.matmul %38, %2, %cst_14 {dimension_numbers = #tpu.dot_dimension_numbers<[1], [0], [0], [1], [0, 0, 1, 1], [], []>} : vector<128x128xf32>, vector<128x128xf32>, vector<128x128xf32> -> vector<128x128xf32>
    %cst_15 = arith.constant dense<0.000000e+00> : vector<128xf32>
    %40 = vector.multi_reduction <add>, %39, %cst_15 [0] : vector<128x128xf32> to vector<128xf32>
    %41 = vector.shape_cast %40 : vector<128xf32> to vector<1x128xf32>
    %cst_16 = arith.constant 1.280000e+02 : f32
    %42 = vector.broadcast %cst_16 : f32 to vector<1x128xf32>
    %43 = arith.divf %41, %42 : vector<1x128xf32>
    %44 = vector.broadcast %43 : vector<1x128xf32> to vector<128x128xf32>
    %45 = arith.subf %39, %44 : vector<128x128xf32>
    %46 = arith.mulf %45, %45 : vector<128x128xf32>
    %cst_17 = arith.constant dense<0.000000e+00> : vector<128xf32>
    %47 = vector.multi_reduction <add>, %46, %cst_17 [0] : vector<128x128xf32> to vector<128xf32>
    %48 = vector.shape_cast %47 : vector<128xf32> to vector<1x128xf32>
    %cst_18 = arith.constant 1.280000e+02 : f32
    %49 = vector.broadcast %cst_18 : f32 to vector<1x128xf32>
    %50 = arith.divf %48, %49 : vector<1x128xf32>
    %cst_19 = arith.constant 9.99999974E-6 : f32
    %51 = vector.broadcast %cst_19 : f32 to vector<1x128xf32>
    %52 = arith.addf %50, %51 : vector<1x128xf32>
    %53 = math.rsqrt %52 : vector<1x128xf32>
    %54 = vector.broadcast %53 : vector<1x128xf32> to vector<128x128xf32>
    %55 = arith.mulf %45, %54 : vector<128x128xf32>
    %56 = vector.broadcast %8 : vector<1x128xf32> to vector<128x128xf32>
    %57 = arith.mulf %55, %56 : vector<128x128xf32>
    %58 = vector.broadcast %9 : vector<1x128xf32> to vector<128x128xf32>
    %59 = arith.addf %57, %58 : vector<128x128xf32>
    %cst_20 = arith.constant 0.000000e+00 : f32
    %60 = vector.broadcast %cst_20 : f32 to vector<128x128xf32>
    %61 = arith.cmpf ogt, %59, %60 : vector<128x128xf32>
    %cst_21 = arith.constant 0.00999999977 : f32
    %62 = vector.broadcast %cst_21 : f32 to vector<128x128xf32>
    %63 = arith.mulf %62, %59 : vector<128x128xf32>
    %64 = arith.select %61, %59, %63 : vector<128x128xi1>, vector<128x128xf32>
    %cst_22 = arith.constant dense<0.000000e+00> : vector<128x128xf32>
    %65 = tpu.matmul %64, %3, %cst_22 {dimension_numbers = #tpu.dot_dimension_numbers<[1], [0], [0], [1], [0, 0, 1, 1], [], []>} : vector<128x128xf32>, vector<128x128xf32>, vector<128x128xf32> -> vector<128x128xf32>
    %cst_23 = arith.constant dense<0.000000e+00> : vector<128xf32>
    %66 = vector.multi_reduction <add>, %65, %cst_23 [0] : vector<128x128xf32> to vector<128xf32>
    %67 = vector.shape_cast %66 : vector<128xf32> to vector<1x128xf32>
    %cst_24 = arith.constant 1.280000e+02 : f32
    %68 = vector.broadcast %cst_24 : f32 to vector<1x128xf32>
    %69 = arith.divf %67, %68 : vector<1x128xf32>
    %70 = vector.broadcast %69 : vector<1x128xf32> to vector<128x128xf32>
    %71 = arith.subf %65, %70 : vector<128x128xf32>
    %72 = arith.mulf %71, %71 : vector<128x128xf32>
    %cst_25 = arith.constant dense<0.000000e+00> : vector<128xf32>
    %73 = vector.multi_reduction <add>, %72, %cst_25 [0] : vector<128x128xf32> to vector<128xf32>
    %74 = vector.shape_cast %73 : vector<128xf32> to vector<1x128xf32>
    %cst_26 = arith.constant 1.280000e+02 : f32
    %75 = vector.broadcast %cst_26 : f32 to vector<1x128xf32>
    %76 = arith.divf %74, %75 : vector<1x128xf32>
    %cst_27 = arith.constant 9.99999974E-6 : f32
    %77 = vector.broadcast %cst_27 : f32 to vector<1x128xf32>
    %78 = arith.addf %76, %77 : vector<1x128xf32>
    %79 = math.rsqrt %78 : vector<1x128xf32>
    %80 = vector.broadcast %79 : vector<1x128xf32> to vector<128x128xf32>
    %81 = arith.mulf %71, %80 : vector<128x128xf32>
    %82 = vector.broadcast %10 : vector<1x128xf32> to vector<128x128xf32>
    %83 = arith.mulf %81, %82 : vector<128x128xf32>
    %84 = vector.broadcast %11 : vector<1x128xf32> to vector<128x128xf32>
    %85 = arith.addf %83, %84 : vector<128x128xf32>
    %cst_28 = arith.constant 0.000000e+00 : f32
    %86 = vector.broadcast %cst_28 : f32 to vector<128x128xf32>
    %87 = arith.cmpf ogt, %85, %86 : vector<128x128xf32>
    %cst_29 = arith.constant 0.00999999977 : f32
    %88 = vector.broadcast %cst_29 : f32 to vector<128x128xf32>
    %89 = arith.mulf %88, %85 : vector<128x128xf32>
    %90 = arith.select %87, %85, %89 : vector<128x128xi1>, vector<128x128xf32>
    %cst_30 = arith.constant dense<0.000000e+00> : vector<128x128xf32>
    %91 = tpu.matmul %90, %4, %cst_30 {dimension_numbers = #tpu.dot_dimension_numbers<[1], [0], [0], [1], [0, 0, 1, 1], [], []>} : vector<128x128xf32>, vector<128x128xf32>, vector<128x128xf32> -> vector<128x128xf32>
    %92 = vector.broadcast %12 : vector<1x128xf32> to vector<128x128xf32>
    %93 = arith.addf %91, %92 : vector<128x128xf32>
    %c0_31 = arith.constant 0 : index
    %c0_32 = arith.constant 0 : index
    %94 = vector.load %arg2[%c0_31, %c0_32] : memref<128x128xf32, #tpu.memory_space<vmem>>, vector<128x128xf32>
    tpu.vector_store %arg2[%c0_31, %c0_32], %93 {strides = array<i32>} : memref<128x128xf32, #tpu.memory_space<vmem>>, vector<128x128xf32>,
    return
  }
}

</mosaic_0001>

<llo_original>
// kernel: tpu_custom_call.1
$region0: #{tpu_custom_call.1}
  #allocation0 [shape = 'u32[]', space=smem, size = 0x4, offset = 0x4, fixed_abs, tag = 'smem constant byte address 0x4 - core index']
  #allocation1 [shape = 'u32[72,128]{1,0:T(1,128)}', space=vmem, size = 0x9000, scoped, tag = 'internal scratch']
  %s0 = inlined_call_operand.vmem [shape: f32[128,16], index: 0, kind: input, shape index: {}]
  %s1 = inlined_call_operand.hbm [shape: f32[408,128], index: 1, kind: input, shape index: {}]
  %s2 = inlined_call_operand.hbm [shape: f32[128,128], index: 2, kind: output, shape index: {}]
  %s3 = sld [smem:[#allocation0]]
  $region22: #{tpu_custom_call.1} parent=0
    _
  %s5 = ssub.s32 1, %s3
  %s6 = scalar_select 0, %s5, %s3
  $region1: #{tpu_custom_call.1} parent=0
    #allocation2 [shape = 'u8[208896]{0}', space=vmem, size = 0x33000, scoped, tag = 'input window, operand 1, single buffered']
    #allocation3 [shape = 's32[1]{0}', space=sflag, size = 0x4, scoped, tag = 'scoped memory for tpu_custom_call.1']
    #allocation4 [shape = 's32[1]{0}', space=sflag, size = 0x4, scoped, tag = 'scoped memory for tpu_custom_call.1']
    #allocation5 [shape = 'u8[65536]{0}', space=vmem, size = 0x10000, scoped, tag = 'output window, operand 0, single buffered']
    %7 = vsyncpa [#allocation3], 0
    %8 = vsyncpa [#allocation4], 0
    // Predicated region
    $region2: #{tpu_custom_call.1} parent=1 // pred_check
      _
    $region3: #{tpu_custom_call.1} parent=1 // pred_check_branch
      %10 = sbr.rel (0) target = $region5
    $region4: #{tpu_custom_call.1} parent=1 // pred_region
      _
    $region5: #{tpu_custom_call.1} parent=1 // pred_fallthru
      _
    // Predicated region
    $region6: #{tpu_custom_call.1} parent=1 // pred_check
      _
    $region7: #{tpu_custom_call.1} parent=1 // pred_check_branch
      %12 = sbr.rel (0) target = $region9
    $region8: #{tpu_custom_call.1} parent=1 // pred_region
      %14 = vsyncadd [#allocation3], 0
      %s15 = sshll.u32 %s1, 4
      %s16 = int_to_ptr.hbm [resolvable:$true] %s15
      %s17 = sshll.u32 [#allocation2], 4
      %s18 = int_to_ptr.vmem [resolvable:$true] %s17
      %23 = dma.hbm_to_vmem [thread:$0]  %s16, 6528, %s18, [#allocation3], 128, 128, 8
    $region9: #{tpu_custom_call.1} parent=1 // pred_fallthru
      _
    // Predicated region
    $region10: #{tpu_custom_call.1} parent=1 // pred_check
      _
    $region11: #{tpu_custom_call.1} parent=1 // pred_check_branch
      %25 = sbr.rel (0) target = $region13
    $region12: #{tpu_custom_call.1} parent=1 // pred_region
      %27 = dma.done [#allocation3], 6528
    $region13: #{tpu_custom_call.1} parent=1 // pred_fallthru
      _
    %v28 = vld [vmem:[%s0] sm:$0xff]
    %v29 = vld [vmem:[%s0 + $0x8] sm:$0xff]
    %v30 = vld [vmem:[%s0 + $0x10] sm:$0xff]
    %v31 = vld [vmem:[%s0 + $0x18] sm:$0xff]
    %v32 = vld [vmem:[%s0 + $0x20] sm:$0xff]
    %v33 = vld [vmem:[%s0 + $0x28] sm:$0xff]
    %v34 = vld [vmem:[%s0 + $0x30] sm:$0xff]
    %v35 = vld [vmem:[%s0 + $0x38] sm:$0xff]
    %v36 = vld [vmem:[%s0 + $0x40] sm:$0xff]
    %v37 = vld [vmem:[%s0 + $0x48] sm:$0xff]
    %v38 = vld [vmem:[%s0 + $0x50] sm:$0xff]
    %v39 = vld [vmem:[%s0 + $0x58] sm:$0xff]
    %v40 = vld [vmem:[%s0 + $0x60] sm:$0xff]
    %v41 = vld [vmem:[%s0 + $0x68] sm:$0xff]
    %v42 = vld [vmem:[%s0 + $0x70] sm:$0xff]
    %v43 = vld [vmem:[%s0 + $0x78] sm:$0xff]
    %v44 = vld [vmem:[#allocation2] sm:$0xff]
    %v45 = vld [vmem:[#allocation2 + $0x8] sm:$0xff]
    %v46 = vld [vmem:[#allocation2 + $0x10] sm:$0xff]
    %v47 = vld [vmem:[#allocation2 + $0x18] sm:$0xff]
    %v48 = vld [vmem:[#allocation2 + $0x20] sm:$0xff]
    %v49 = vld [vmem:[#allocation2 + $0x28] sm:$0xff]
    %v50 = vld [vmem:[#allocation2 + $0x30] sm:$0xff]
    %v51 = vld [vmem:[#allocation2 + $0x38] sm:$0xff]
    %v52 = vld [vmem:[#allocation2 + $0x40] sm:$0xff]
    %v53 = vld [vmem:[#allocation2 + $0x48] sm:$0xff]
    %v54 = vld [vmem:[#allocation2 + $0x50] sm:$0xff]
    %v55 = vld [vmem:[#allocation2 + $0x58] sm:$0xff]
    %v56 = vld [vmem:[#allocation2 + $0x60] sm:$0xff]
    %v57 = vld [vmem:[#allocation2 + $0x68] sm:$0xff]
    %v58 = vld [vmem:[#allocation2 + $0x70] sm:$0xff]
    %v59 = vld [vmem:[#allocation2 + $0x78] sm:$0xff]
    %v60 = vld [vmem:[#allocation2 + $0x80] sm:$0xff]
    %v61 = vld [vmem:[#allocation2 + $0x88] sm:$0xff]
    %v62 = vld [vmem:[#allocation2 + $0x90] sm:$0xff]
    %v63 = vld [vmem:[#allocation2 + $0x98] sm:$0xff]
    %v64 = vld [vmem:[#allocation2 + $0xa0] sm:$0xff]
    %v65 = vld [vmem:[#allocation2 + $0xa8] sm:$0xff]
    %v66 = vld [vmem:[#allocation2 + $0xb0] sm:$0xff]
    %v67 = vld [vmem:[#allocation2 + $0xb8] sm:$0xff]
    %v68 = vld [vmem:[#allocation2 + $0xc0] sm:$0xff]
    %v69 = vld [vmem:[#allocation2 + $0xc8] sm:$0xff]
    %v70 = vld [vmem:[#allocation2 + $0xd0] sm:$0xff]
    %v71 = vld [vmem:[#allocation2 + $0xd8] sm:$0xff]
    %v72 = vld [vmem:[#allocation2 + $0xe0] sm:$0xff]
    %v73 = vld [vmem:[#allocation2 + $0xe8] sm:$0xff]
    %v74 = vld [vmem:[#allocation2 + $0xf0] sm:$0xff]
    %v75 = vld [vmem:[#allocation2 + $0xf8] sm:$0xff]
    %v76 = vld [vmem:[#allocation2 + $0x100] sm:$0xff]
    %v77 = vld [vmem:[#allocation2 + $0x108] sm:$0xff]
    %v78 = vld [vmem:[#allocation2 + $0x110] sm:$0xff]
    %v79 = vld [vmem:[#allocation2 + $0x118] sm:$0xff]
    %v80 = vld [vmem:[#allocation2 + $0x120] sm:$0xff]
    %v81 = vld [vmem:[#allocation2 + $0x128] sm:$0xff]
    %v82 = vld [vmem:[#allocation2 + $0x130] sm:$0xff]
    %v83 = vld [vmem:[#allocation2 + $0x138] sm:$0xff]
    %v84 = vld [vmem:[#allocation2 + $0x140] sm:$0xff]
    %v85 = vld [vmem:[#allocation2 + $0x148] sm:$0xff]
    %v86 = vld [vmem:[#allocation2 + $0x150] sm:$0xff]
    %v87 = vld [vmem:[#allocation2 + $0x158] sm:$0xff]
    %v88 = vld [vmem:[#allocation2 + $0x160] sm:$0xff]
    %v89 = vld [vmem:[#allocation2 + $0x168] sm:$0xff]
    %v90 = vld [vmem:[#allocation2 + $0x170] sm:$0xff]
    %v91 = vld [vmem:[#allocation2 + $0x178] sm:$0xff]
    %v92 = vld [vmem:[#allocation2 + $0x180] sm:$0xff]
    %v93 = vld [vmem:[#allocation2 + $0x188] sm:$0xff]
    %v94 = vld [vmem:[#allocation2 + $0x190] sm:$0xff]
    %vm95 = vcmask 130048
    %v97 = vsel %vm95, %v28, 0
    %v100 = vsel %vm95, %v29, 0
    %v103 = vsel %vm95, %v30, 0
    %v106 = vsel %vm95, %v31, 0
    %v109 = vsel %vm95, %v32, 0
    %v112 = vsel %vm95, %v33, 0
    %v115 = vsel %vm95, %v34, 0
    %v118 = vsel %vm95, %v35, 0
    %v121 = vsel %vm95, %v36, 0
    %v124 = vsel %vm95, %v37, 0
    %v127 = vsel %vm95, %v38, 0
    %v130 = vsel %vm95, %v39, 0
    %v133 = vsel %vm95, %v40, 0
    %v136 = vsel %vm95, %v41, 0
    %v139 = vsel %vm95, %v42, 0
    %v142 = vsel %vm95, %v43, 0
    %144 = vmatpush.msra.mxu0 0.0
    %145 = vmatpush.msra.mxu0 0.0
    %146 = vmatpush.msra.mxu0 0.0
    %147 = vmatpush.msra.mxu0 0.0
    %148 = vmatpush.msra.mxu0 0.0
    %149 = vmatpush.msra.mxu0 0.0
    %150 = vmatpush.msra.mxu0 0.0
    %151 = vmatpush.msra.mxu0 0.0
    %152 = vmatpush.msra.mxu0 0.0
    %153 = vmatpush.msra.mxu0 0.0
    %154 = vmatpush.msra.mxu0 0.0
    %155 = vmatpush.msra.mxu0 0.0
    %156 = vmatpush.msra.mxu0 0.0
    %157 = vmatpush.msra.mxu0 0.0
    %158 = vmatpush.msra.mxu0 %v45
    %159 = vmatpush.msra.mxu0 %v44
    %160 = vmatmul.f32.gmra.mxu0 %v97
    %v161 = vpop.f32.mrf.mxu0
    %v162 = vadd.f32 0.0, %v161
    %163 = vmatmul.f32.gmra.mxu0 %v100
    %v164 = vpop.f32.mrf.mxu0
    %v165 = vadd.f32 0.0, %v164
    %166 = vmatmul.f32.gmra.mxu0 %v103
    %v167 = vpop.f32.mrf.mxu0
    %v168 = vadd.f32 0.0, %v167
    %169 = vmatmul.f32.gmra.mxu0 %v106
    %v170 = vpop.f32.mrf.mxu0
    %v171 = vadd.f32 0.0, %v170
    %172 = vmatmul.f32.gmra.mxu0 %v109
    %v173 = vpop.f32.mrf.mxu0
    %v174 = vadd.f32 0.0, %v173
    %175 = vmatmul.f32.gmra.mxu0 %v112
    %v176 = vpop.f32.mrf.mxu0
    %v177 = vadd.f32 0.0, %v176
    %178 = vmatmul.f32.gmra.mxu0 %v115
    %v179 = vpop.f32.mrf.mxu0
    %v180 = vadd.f32 0.0, %v179
    %181 = vmatmul.f32.gmra.mxu0 %v118
    %v182 = vpop.f32.mrf.mxu0
    %v183 = vadd.f32 0.0, %v182
    %184 = vmatmul.f32.gmra.mxu0 %v121
    %v185 = vpop.f32.mrf.mxu0
    %v186 = vadd.f32 0.0, %v185
    %187 = vmatmul.f32.gmra.mxu0 %v124
    %v188 = vpop.f32.mrf.mxu0
    %v189 = vadd.f32 0.0, %v188
    %190 = vmatmul.f32.gmra.mxu0 %v127
    %v191 = vpop.f32.mrf.mxu0
    %v192 = vadd.f32 0.0, %v191
    %193 = vmatmul.f32.gmra.mxu0 %v130
    %v194 = vpop.f32.mrf.mxu0
    %v195 = vadd.f32 0.0, %v194
    %196 = vmatmul.f32.gmra.mxu0 %v133
    %v197 = vpop.f32.mrf.mxu0
    %v198 = vadd.f32 0.0, %v197
    %199 = vmatmul.f32.gmra.mxu0 %v136
    %v200 = vpop.f32.mrf.mxu0
    %v201 = vadd.f32 0.0, %v200
    %202 = vmatmul.f32.gmra.mxu0 %v139
    %v203 = vpop.f32.mrf.mxu0
    %v204 = vadd.f32 0.0, %v203
    %205 = vmatmul.f32.gmra.mxu0 %v142
    %v206 = vpop.f32.mrf.mxu0
    %v207 = vadd.f32 0.0, %v206
    %208 = vdwg.mxu0
    %v209 = vadd.f32 %v162, %v165
    %v210 = vadd.f32 %v209, %v168
    %v211 = vadd.f32 %v210, %v171
    %v212 = vadd.f32 %v211, %v174
    %v213 = vadd.f32 %v212, %v177
    %v214 = vadd.f32 %v213, %v180
    %v215 = vadd.f32 %v214, %v183
    %v216 = vadd.f32 %v215, %v186
    %v217 = vadd.f32 %v216, %v189
    %v218 = vadd.f32 %v217, %v192
    %v219 = vadd.f32 %v218, %v195
    %v220 = vadd.f32 %v219, %v198
    %v221 = vadd.f32 %v220, %v201
    %v222 = vadd.f32 %v221, %v204
    %v223 = vadd.f32 %v222, %v207
    %v224 = vrot.slane %v223, 4
    %v225 = vadd.f32 %v223, %v224
    %v226 = vrot.slane %v225, 2
    %v227 = vadd.f32 %v225, %v226
    %v228 = vrot.slane %v227, 1
    %v229 = vadd.f32 %v227, %v228
    %v230 = vrcp.pop 128.0
    %v231 = vmul.f32 128.0, %v230
    %v232 = vsub.f32 1.0, %v231
    %v233 = vmul.f32 %v230, %v232
    %v234 = vadd.f32 %v230, %v233
    %vm235 = vweird.f32 %v230
    %v236 = vsel %vm235, %v230, %v234
    %v237 = vmul.f32 %v229, %v236
    %v238 = vsub.f32 %v162, %v237
    %v239 = vsub.f32 %v165, %v237
    %v240 = vsub.f32 %v168, %v237
    %v241 = vsub.f32 %v171, %v237
    %v242 = vsub.f32 %v174, %v237
    %v243 = vsub.f32 %v177, %v237
    %v244 = vsub.f32 %v180, %v237
    %v245 = vsub.f32 %v183, %v237
    %v246 = vsub.f32 %v186, %v237
    %v247 = vsub.f32 %v189, %v237
    %v248 = vsub.f32 %v192, %v237
    %v249 = vsub.f32 %v195, %v237
    %v250 = vsub.f32 %v198, %v237
    %v251 = vsub.f32 %v201, %v237
    %v252 = vsub.f32 %v204, %v237
    %v253 = vsub.f32 %v207, %v237
    %v254 = vmul.f32 %v238, %v238
    %v255 = vmul.f32 %v239, %v239
    %v256 = vmul.f32 %v240, %v240
    %v257 = vmul.f32 %v241, %v241
    %v258 = vmul.f32 %v242, %v242
    %v259 = vmul.f32 %v243, %v243
    %v260 = vmul.f32 %v244, %v244
    %v261 = vmul.f32 %v245, %v245
    %v262 = vmul.f32 %v246, %v246
    %v263 = vmul.f32 %v247, %v247
    %v264 = vmul.f32 %v248, %v248
    %v265 = vmul.f32 %v249, %v249
    %v266 = vmul.f32 %v250, %v250
    %v267 = vmul.f32 %v251, %v251
    %v268 = vmul.f32 %v252, %v252
    %v269 = vmul.f32 %v253, %v253
    %v270 = vadd.f32 %v254, %v255
    %v271 = vadd.f32 %v270, %v256
    %v272 = vadd.f32 %v271, %v257
    %v273 = vadd.f32 %v272, %v258
    %v274 = vadd.f32 %v273, %v259
    %v275 = vadd.f32 %v274, %v260
    %v276 = vadd.f32 %v275, %v261
    %v277 = vadd.f32 %v276, %v262
    %v278 = vadd.f32 %v277, %v263
    %v279 = vadd.f32 %v278, %v264
    %v280 = vadd.f32 %v279, %v265
    %v281 = vadd.f32 %v280, %v266
    %v282 = vadd.f32 %v281, %v267
    %v283 = vadd.f32 %v282, %v268
    %v284 = vadd.f32 %v283, %v269
    %v285 = vrot.slane %v284, 4
    %v286 = vadd.f32 %v284, %v285
    %v287 = vrot.slane %v286, 2
    %v288 = vadd.f32 %v286, %v287
    %v289 = vrot.slane %v288, 1
    %v290 = vadd.f32 %v288, %v289
    %v291 = vmul.f32 %v290, %v236
    %v292 = vadd.f32 %v291, 1e-05
    %v293 = vrsqrt.pop %v292
    %v294 = vmul.f32 %v293, %v292
    %v295 = vmul.f32 %v294, %v293
    %v296 = vmul.f32 0.5, %v295
    %v297 = vsub.f32 1.5, %v296
    %v298 = vmul.f32 %v293, %v297
    %vm299 = vweird.f32 %v292
    %vm300 = vweird.f32 %v293
    %vm301 = vmor %vm299, %vm300
    %v302 = vsel %vm301, %v293, %v298
    %v303 = vmul.f32 %v238, %v302
    %v304 = vmul.f32 %v239, %v302
    %v305 = vmul.f32 %v240, %v302
    %v306 = vmul.f32 %v241, %v302
    %v307 = vmul.f32 %v242, %v302
    %v308 = vmul.f32 %v243, %v302
    %v309 = vmul.f32 %v244, %v302
    %v310 = vmul.f32 %v245, %v302
    %v311 = vmul.f32 %v246, %v302
    %v312 = vmul.f32 %v247, %v302
    %v313 = vmul.f32 %v248, %v302
    %v314 = vmul.f32 %v249, %v302
    %v315 = vmul.f32 %v250, %v302
    %v316 = vmul.f32 %v251, %v302
    %v317 = vmul.f32 %v252, %v302
    %v318 = vmul.f32 %v253, %v302
    %v319 = vperm.slane %v94, 0
    %v320 = vmul.f32 %v303, %v319
    %v321 = vmul.f32 %v304, %v319
    %v322 = vmul.f32 %v305, %v319
    %v323 = vmul.f32 %v306, %v319
    %v324 = vmul.f32 %v307, %v319
    %v325 = vmul.f32 %v308, %v319
    %v326 = vmul.f32 %v309, %v319
    %v327 = vmul.f32 %v310, %v319
    %v328 = vmul.f32 %v311, %v319
    %v329 = vmul.f32 %v312, %v319
    %v330 = vmul.f32 %v313, %v319
    %v331 = vmul.f32 %v314, %v319
    %v332 = vmul.f32 %v315, %v319
    %v333 = vmul.f32 %v316, %v319
    %v334 = vmul.f32 %v317, %v319
    %v335 = vmul.f32 %v318, %v319
    %v336 = vperm.slane %v94, 1
    %v337 = vadd.f32 %v320, %v336
    %v338 = vadd.f32 %v321, %v336
    %v339 = vadd.f32 %v322, %v336
    %v340 = vadd.f32 %v323, %v336
    %v341 = vadd.f32 %v324, %v336
    %v342 = vadd.f32 %v325, %v336
    %v343 = vadd.f32 %v326, %v336
    %v344 = vadd.f32 %v327, %v336
    %v345 = vadd.f32 %v328, %v336
    %v346 = vadd.f32 %v329, %v336
    %v347 = vadd.f32 %v330, %v336
    %v348 = vadd.f32 %v331, %v336
    %v349 = vadd.f32 %v332, %v336
    %v350 = vadd.f32 %v333, %v336
    %v351 = vadd.f32 %v334, %v336
    %v352 = vadd.f32 %v335, %v336
    %vm353 = vcmp.gt.f32.partialorder %v337, 0.0
    %vm354 = vcmp.gt.f32.partialorder %v338, 0.0
    %vm355 = vcmp.gt.f32.partialorder %v339, 0.0
    %vm356 = vcmp.gt.f32.partialorder %v340, 0.0
    %vm357 = vcmp.gt.f32.partialorder %v341, 0.0
    %vm358 = vcmp.gt.f32.partialorder %v342, 0.0
    %vm359 = vcmp.gt.f32.partialorder %v343, 0.0
    %vm360 = vcmp.gt.f32.partialorder %v344, 0.0
    %vm361 = vcmp.gt.f32.partialorder %v345, 0.0
    %vm362 = vcmp.gt.f32.partialorder %v346, 0.0
    %vm363 = vcmp.gt.f32.partialorder %v347, 0.0
    %vm364 = vcmp.gt.f32.partialorder %v348, 0.0
    %vm365 = vcmp.gt.f32.partialorder %v349, 0.0
    %vm366 = vcmp.gt.f32.partialorder %v350, 0.0
    %vm367 = vcmp.gt.f32.partialorder %v351, 0.0
    %vm368 = vcmp.gt.f32.partialorder %v352, 0.0
    %v369 = vmul.f32 %v337, 0.01
    %v370 = vmul.f32 %v338, 0.01
    %v371 = vmul.f32 %v339, 0.01
    %v372 = vmul.f32 %v340, 0.01
    %v373 = vmul.f32 %v341, 0.01
    %v374 = vmul.f32 %v342, 0.01
    %v375 = vmul.f32 %v343, 0.01
    %v376 = vmul.f32 %v344, 0.01
    %v377 = vmul.f32 %v345, 0.01
    %v378 = vmul.f32 %v346, 0.01
    %v379 = vmul.f32 %v347, 0.01
    %v380 = vmul.f32 %v348, 0.01
    %v381 = vmul.f32 %v349, 0.01
    %v382 = vmul.f32 %v350, 0.01
    %v383 = vmul.f32 %v351, 0.01
    %v384 = vmul.f32 %v352, 0.01
    %v385 = vsel %vm353, %v337, %v369
    %v386 = vsel %vm354, %v338, %v370
    %v387 = vsel %vm355, %v339, %v371
    %v388 = vsel %vm356, %v340, %v372
    %v389 = vsel %vm357, %v341, %v373
    %v390 = vsel %vm358, %v342, %v374
    %v391 = vsel %vm359, %v343, %v375
    %v392 = vsel %vm360, %v344, %v376
    %v393 = vsel %vm361, %v345, %v377
    %v394 = vsel %vm362, %v346, %v378
    %v395 = vsel %vm363, %v347, %v379
    %v396 = vsel %vm364, %v348, %v380
    %v397 = vsel %vm365, %v349, %v381
    %v398 = vsel %vm366, %v350, %v382
    %v399 = vsel %vm367, %v351, %v383
    %v400 = vsel %vm368, %v352, %v384
    %401 = vmatpush.msra.mxu0 %v61
    %402 = vmatpush.msra.mxu0 %v60
    %403 = vmatpush.msra.mxu0 %v59
    %404 = vmatpush.msra.mxu0 %v58
    %405 = vmatpush.msra.mxu0 %v57
    %406 = vmatpush.msra.mxu0 %v56
    %407 = vmatpush.msra.mxu0 %v55
    %408 = vmatpush.msra.mxu0 %v54
    %409 = vmatpush.msra.mxu0 %v53
    %410 = vmatpush.msra.mxu0 %v52
    %411 = vmatpush.msra.mxu0 %v51
    %412 = vmatpush.msra.mxu0 %v50
    %413 = vmatpush.msra.mxu0 %v49
    %414 = vmatpush.msra.mxu0 %v48
    %415 = vmatpush.msra.mxu0 %v47
    %416 = vmatpush.msra.mxu0 %v46
    %417 = vmatmul.f32.gmra.mxu0 %v385
    %v418 = vpop.f32.mrf.mxu0
    %v419 = vadd.f32 0.0, %v418
    %420 = vmatmul.f32.gmra.mxu0 %v386
    %v421 = vpop.f32.mrf.mxu0
    %v422 = vadd.f32 0.0, %v421
    %423 = vmatmul.f32.gmra.mxu0 %v387
    %v424 = vpop.f32.mrf.mxu0
    %v425 = vadd.f32 0.0, %v424
    %426 = vmatmul.f32.gmra.mxu0 %v388
    %v427 = vpop.f32.mrf.mxu0
    %v428 = vadd.f32 0.0, %v427
    %429 = vmatmul.f32.gmra.mxu0 %v389
    %v430 = vpop.f32.mrf.mxu0
    %v431 = vadd.f32 0.0, %v430
    %432 = vmatmul.f32.gmra.mxu0 %v390
    %v433 = vpop.f32.mrf.mxu0
    %v434 = vadd.f32 0.0, %v433
    %435 = vmatmul.f32.gmra.mxu0 %v391
    %v436 = vpop.f32.mrf.mxu0
    %v437 = vadd.f32 0.0, %v436
    %438 = vmatmul.f32.gmra.mxu0 %v392
    %v439 = vpop.f32.mrf.mxu0
    %v440 = vadd.f32 0.0, %v439
    %441 = vmatmul.f32.gmra.mxu0 %v393
    %v442 = vpop.f32.mrf.mxu0
    %v443 = vadd.f32 0.0, %v442
    %444 = vmatmul.f32.gmra.mxu0 %v394
    %v445 = vpop.f32.mrf.mxu0
    %v446 = vadd.f32 0.0, %v445
    %447 = vmatmul.f32.gmra.mxu0 %v395
    %v448 = vpop.f32.mrf.mxu0
    %v449 = vadd.f32 0.0, %v448
    %450 = vmatmul.f32.gmra.mxu0 %v396
    %v451 = vpop.f32.mrf.mxu0
    %v452 = vadd.f32 0.0, %v451
    %453 = vmatmul.f32.gmra.mxu0 %v397
    %v454 = vpop.f32.mrf.mxu0
    %v455 = vadd.f32 0.0, %v454
    %456 = vmatmul.f32.gmra.mxu0 %v398
    %v457 = vpop.f32.mrf.mxu0
    %v458 = vadd.f32 0.0, %v457
    %459 = vmatmul.f32.gmra.mxu0 %v399
    %v460 = vpop.f32.mrf.mxu0
    %v461 = vadd.f32 0.0, %v460
    %462 = vmatmul.f32.gmra.mxu0 %v400
    %v463 = vpop.f32.mrf.mxu0
    %v464 = vadd.f32 0.0, %v463
    %465 = vdwg.mxu0
    %v466 = vadd.f32 %v419, %v422
    %v467 = vadd.f32 %v466, %v425
    %v468 = vadd.f32 %v467, %v428
    %v469 = vadd.f32 %v468, %v431
    %v470 = vadd.f32 %v469, %v434
    %v471 = vadd.f32 %v470, %v437
    %v472 = vadd.f32 %v471, %v440
    %v473 = vadd.f32 %v472, %v443
    %v474 = vadd.f32 %v473, %v446
    %v475 = vadd.f32 %v474, %v449
    %v476 = vadd.f32 %v475, %v452
    %v477 = vadd.f32 %v476, %v455
    %v478 = vadd.f32 %v477, %v458
    %v479 = vadd.f32 %v478, %v461
    %v480 = vadd.f32 %v479, %v464
    %v481 = vrot.slane %v480, 4
    %v482 = vadd.f32 %v480, %v481
    %v483 = vrot.slane %v482, 2
    %v484 = vadd.f32 %v482, %v483
    %v485 = vrot.slane %v484, 1
    %v486 = vadd.f32 %v484, %v485
    %v487 = vmul.f32 %v486, %v236
    %v488 = vsub.f32 %v419, %v487
    %v489 = vsub.f32 %v422, %v487
    %v490 = vsub.f32 %v425, %v487
    %v491 = vsub.f32 %v428, %v487
    %v492 = vsub.f32 %v431, %v487
    %v493 = vsub.f32 %v434, %v487
    %v494 = vsub.f32 %v437, %v487
    %v495 = vsub.f32 %v440, %v487
    %v496 = vsub.f32 %v443, %v487
    %v497 = vsub.f32 %v446, %v487
    %v498 = vsub.f32 %v449, %v487
    %v499 = vsub.f32 %v452, %v487
    %v500 = vsub.f32 %v455, %v487
    %v501 = vsub.f32 %v458, %v487
    %v502 = vsub.f32 %v461, %v487
    %v503 = vsub.f32 %v464, %v487
    %v504 = vmul.f32 %v488, %v488
    %v505 = vmul.f32 %v489, %v489
    %v506 = vmul.f32 %v490, %v490
    %v507 = vmul.f32 %v491, %v491
    %v508 = vmul.f32 %v492, %v492
    %v509 = vmul.f32 %v493, %v493
    %v510 = vmul.f32 %v494, %v494
    %v511 = vmul.f32 %v495, %v495
    %v512 = vmul.f32 %v496, %v496
    %v513 = vmul.f32 %v497, %v497
    %v514 = vmul.f32 %v498, %v498
    %v515 = vmul.f32 %v499, %v499
    %v516 = vmul.f32 %v500, %v500
    %v517 = vmul.f32 %v501, %v501
    %v518 = vmul.f32 %v502, %v502
    %v519 = vmul.f32 %v503, %v503
    %v520 = vadd.f32 %v504, %v505
    %v521 = vadd.f32 %v520, %v506
    %v522 = vadd.f32 %v521, %v507
    %v523 = vadd.f32 %v522, %v508
    %v524 = vadd.f32 %v523, %v509
    %v525 = vadd.f32 %v524, %v510
    %v526 = vadd.f32 %v525, %v511
    %v527 = vadd.f32 %v526, %v512
    %v528 = vadd.f32 %v527, %v513
    %v529 = vadd.f32 %v528, %v514
    %v530 = vadd.f32 %v529, %v515
    %v531 = vadd.f32 %v530, %v516
    %v532 = vadd.f32 %v531, %v517
    %v533 = vadd.f32 %v532, %v518
    %v534 = vadd.f32 %v533, %v519
    %v535 = vrot.slane %v534, 4
    %v536 = vadd.f32 %v534, %v535
    %v537 = vrot.slane %v536, 2
    %v538 = vadd.f32 %v536, %v537
    %v539 = vrot.slane %v538, 1
    %v540 = vadd.f32 %v538, %v539
    %v541 = vmul.f32 %v540, %v236
    %v542 = vadd.f32 %v541, 1e-05
    %v543 = vrsqrt.pop %v542
    %v544 = vmul.f32 %v543, %v542
    %v545 = vmul.f32 %v544, %v543
    %v546 = vmul.f32 0.5, %v545
    %v547 = vsub.f32 1.5, %v546
    %v548 = vmul.f32 %v543, %v547
    %vm549 = vweird.f32 %v542
    %vm550 = vweird.f32 %v543
    %vm551 = vmor %vm549, %vm550
    %v552 = vsel %vm551, %v543, %v548
    %v553 = vmul.f32 %v488, %v552
    %v554 = vmul.f32 %v489, %v552
    %v555 = vmul.f32 %v490, %v552
    %v556 = vmul.f32 %v491, %v552
    %v557 = vmul.f32 %v492, %v552
    %v558 = vmul.f32 %v493, %v552
    %v559 = vmul.f32 %v494, %v552
    %v560 = vmul.f32 %v495, %v552
    %v561 = vmul.f32 %v496, %v552
    %v562 = vmul.f32 %v497, %v552
    %v563 = vmul.f32 %v498, %v552
    %v564 = vmul.f32 %v499, %v552
    %v565 = vmul.f32 %v500, %v552
    %v566 = vmul.f32 %v501, %v552
    %v567 = vmul.f32 %v502, %v552
    %v568 = vmul.f32 %v503, %v552
    %v569 = vperm.slane %v94, 2
    %v570 = vmul.f32 %v553, %v569
    %v571 = vmul.f32 %v554, %v569
    %v572 = vmul.f32 %v555, %v569
    %v573 = vmul.f32 %v556, %v569
    %v574 = vmul.f32 %v557, %v569
    %v575 = vmul.f32 %v558, %v569
    %v576 = vmul.f32 %v559, %v569
    %v577 = vmul.f32 %v560, %v569
    %v578 = vmul.f32 %v561, %v569
    %v579 = vmul.f32 %v562, %v569
    %v580 = vmul.f32 %v563, %v569
    %v581 = vmul.f32 %v564, %v569
    %v582 = vmul.f32 %v565, %v569
    %v583 = vmul.f32 %v566, %v569
    %v584 = vmul.f32 %v567, %v569
    %v585 = vmul.f32 %v568, %v569
    %v586 = vperm.slane %v94, 3
    %v587 = vadd.f32 %v570, %v586
    %v588 = vadd.f32 %v571, %v586
    %v589 = vadd.f32 %v572, %v586
    %v590 = vadd.f32 %v573, %v586
    %v591 = vadd.f32 %v574, %v586
    %v592 = vadd.f32 %v575, %v586
    %v593 = vadd.f32 %v576, %v586
    %v594 = vadd.f32 %v577, %v586
    %v595 = vadd.f32 %v578, %v586
    %v596 = vadd.f32 %v579, %v586
    %v597 = vadd.f32 %v580, %v586
    %v598 = vadd.f32 %v581, %v586
    %v599 = vadd.f32 %v582, %v586
    %v600 = vadd.f32 %v583, %v586
    %v601 = vadd.f32 %v584, %v586
    %v602 = vadd.f32 %v585, %v586
    %vm603 = vcmp.gt.f32.partialorder %v587, 0.0
    %vm604 = vcmp.gt.f32.partialorder %v588, 0.0
    %vm605 = vcmp.gt.f32.partialorder %v589, 0.0
    %vm606 = vcmp.gt.f32.partialorder %v590, 0.0
    %vm607 = vcmp.gt.f32.partialorder %v591, 0.0
    %vm608 = vcmp.gt.f32.partialorder %v592, 0.0
    %vm609 = vcmp.gt.f32.partialorder %v593, 0.0
    %vm610 = vcmp.gt.f32.partialorder %v594, 0.0
    %vm611 = vcmp.gt.f32.partialorder %v595, 0.0
    %vm612 = vcmp.gt.f32.partialorder %v596, 0.0
    %vm613 = vcmp.gt.f32.partialorder %v597, 0.0
    %vm614 = vcmp.gt.f32.partialorder %v598, 0.0
    %vm615 = vcmp.gt.f32.partialorder %v599, 0.0
    %vm616 = vcmp.gt.f32.partialorder %v600, 0.0
    %vm617 = vcmp.gt.f32.partialorder %v601, 0.0
    %vm618 = vcmp.gt.f32.partialorder %v602, 0.0
    %v619 = vmul.f32 %v587, 0.01
    %v620 = vmul.f32 %v588, 0.01
    %v621 = vmul.f32 %v589, 0.01
    %v622 = vmul.f32 %v590, 0.01
    %v623 = vmul.f32 %v591, 0.01
    %v624 = vmul.f32 %v592, 0.01
    %v625 = vmul.f32 %v593, 0.01
    %v626 = vmul.f32 %v594, 0.01
    %v627 = vmul.f32 %v595, 0.01
    %v628 = vmul.f32 %v596, 0.01
    %v629 = vmul.f32 %v597, 0.01
    %v630 = vmul.f32 %v598, 0.01
    %v631 = vmul.f32 %v599, 0.01
    %v632 = vmul.f32 %v600, 0.01
    %v633 = vmul.f32 %v601, 0.01
    %v634 = vmul.f32 %v602, 0.01
    %v635 = vsel %vm603, %v587, %v619
    %v636 = vsel %vm604, %v588, %v620
    %v637 = vsel %vm605, %v589, %v621
    %v638 = vsel %vm606, %v590, %v622
    %v639 = vsel %vm607, %v591, %v623
    %v640 = vsel %vm608, %v592, %v624
    %v641 = vsel %vm609, %v593, %v625
    %v642 = vsel %vm610, %v594, %v626
    %v643 = vsel %vm611, %v595, %v627
    %v644 = vsel %vm612, %v596, %v628
    %v645 = vsel %vm613, %v597, %v629
    %v646 = vsel %vm614, %v598, %v630
    %v647 = vsel %vm615, %v599, %v631
    %v648 = vsel %vm616, %v600, %v632
    %v649 = vsel %vm617, %v601, %v633
    %v650 = vsel %vm618, %v602, %v634
    %651 = vmatpush.msra.mxu0 %v77
    %652 = vmatpush.msra.mxu0 %v76
    %653 = vmatpush.msra.mxu0 %v75
    %654 = vmatpush.msra.mxu0 %v74
    %655 = vmatpush.msra.mxu0 %v73
    %656 = vmatpush.msra.mxu0 %v72
    %657 = vmatpush.msra.mxu0 %v71
    %658 = vmatpush.msra.mxu0 %v70
    %659 = vmatpush.msra.mxu0 %v69
    %660 = vmatpush.msra.mxu0 %v68
    %661 = vmatpush.msra.mxu0 %v67
    %662 = vmatpush.msra.mxu0 %v66
    %663 = vmatpush.msra.mxu0 %v65
    %664 = vmatpush.msra.mxu0 %v64
    %665 = vmatpush.msra.mxu0 %v63
    %666 = vmatpush.msra.mxu0 %v62
    %667 = vmatmul.f32.gmra.mxu0 %v635
    %v668 = vpop.f32.mrf.mxu0
    %v669 = vadd.f32 0.0, %v668
    %670 = vmatmul.f32.gmra.mxu0 %v636
    %v671 = vpop.f32.mrf.mxu0
    %v672 = vadd.f32 0.0, %v671
    %673 = vmatmul.f32.gmra.mxu0 %v637
    %v674 = vpop.f32.mrf.mxu0
    %v675 = vadd.f32 0.0, %v674
    %676 = vmatmul.f32.gmra.mxu0 %v638
    %v677 = vpop.f32.mrf.mxu0
    %v678 = vadd.f32 0.0, %v677
    %679 = vmatmul.f32.gmra.mxu0 %v639
    %v680 = vpop.f32.mrf.mxu0
    %v681 = vadd.f32 0.0, %v680
    %682 = vmatmul.f32.gmra.mxu0 %v640
    %v683 = vpop.f32.mrf.mxu0
    %v684 = vadd.f32 0.0, %v683
    %685 = vmatmul.f32.gmra.mxu0 %v641
    %v686 = vpop.f32.mrf.mxu0
    %v687 = vadd.f32 0.0, %v686
    %688 = vmatmul.f32.gmra.mxu0 %v642
    %v689 = vpop.f32.mrf.mxu0
    %v690 = vadd.f32 0.0, %v689
    %691 = vmatmul.f32.gmra.mxu0 %v643
    %v692 = vpop.f32.mrf.mxu0
    %v693 = vadd.f32 0.0, %v692
    %694 = vmatmul.f32.gmra.mxu0 %v644
    %v695 = vpop.f32.mrf.mxu0
    %v696 = vadd.f32 0.0, %v695
    %697 = vmatmul.f32.gmra.mxu0 %v645
    %v698 = vpop.f32.mrf.mxu0
    %v699 = vadd.f32 0.0, %v698
    %700 = vmatmul.f32.gmra.mxu0 %v646
    %v701 = vpop.f32.mrf.mxu0
    %v702 = vadd.f32 0.0, %v701
    %703 = vmatmul.f32.gmra.mxu0 %v647
    %v704 = vpop.f32.mrf.mxu0
    %v705 = vadd.f32 0.0, %v704
    %706 = vmatmul.f32.gmra.mxu0 %v648
    %v707 = vpop.f32.mrf.mxu0
    %v708 = vadd.f32 0.0, %v707
    %709 = vmatmul.f32.gmra.mxu0 %v649
    %v710 = vpop.f32.mrf.mxu0
    %v711 = vadd.f32 0.0, %v710
    %712 = vmatmul.f32.gmra.mxu0 %v650
    %v713 = vpop.f32.mrf.mxu0
    %v714 = vadd.f32 0.0, %v713
    %715 = vdwg.mxu0
    %v716 = vadd.f32 %v669, %v672
    %v717 = vadd.f32 %v716, %v675
    %v718 = vadd.f32 %v717, %v678
    %v719 = vadd.f32 %v718, %v681
    %v720 = vadd.f32 %v719, %v684
    %v721 = vadd.f32 %v720, %v687
    %v722 = vadd.f32 %v721, %v690
    %v723 = vadd.f32 %v722, %v693
    %v724 = vadd.f32 %v723, %v696
    %v725 = vadd.f32 %v724, %v699
    %v726 = vadd.f32 %v725, %v702
    %v727 = vadd.f32 %v726, %v705
    %v728 = vadd.f32 %v727, %v708
    %v729 = vadd.f32 %v728, %v711
    %v730 = vadd.f32 %v729, %v714
    %v731 = vrot.slane %v730, 4
    %v732 = vadd.f32 %v730, %v731
    %v733 = vrot.slane %v732, 2
    %v734 = vadd.f32 %v732, %v733
    %v735 = vrot.slane %v734, 1
    %v736 = vadd.f32 %v734, %v735
    %v737 = vmul.f32 %v736, %v236
    %v738 = vsub.f32 %v669, %v737
    %v739 = vsub.f32 %v672, %v737
    %v740 = vsub.f32 %v675, %v737
    %v741 = vsub.f32 %v678, %v737
    %v742 = vsub.f32 %v681, %v737
    %v743 = vsub.f32 %v684, %v737
    %v744 = vsub.f32 %v687, %v737
    %v745 = vsub.f32 %v690, %v737
    %v746 = vsub.f32 %v693, %v737
    %v747 = vsub.f32 %v696, %v737
    %v748 = vsub.f32 %v699, %v737
    %v749 = vsub.f32 %v702, %v737
    %v750 = vsub.f32 %v705, %v737
    %v751 = vsub.f32 %v708, %v737
    %v752 = vsub.f32 %v711, %v737
    %v753 = vsub.f32 %v714, %v737
    %v754 = vmul.f32 %v738, %v738
    %v755 = vmul.f32 %v739, %v739
    %v756 = vmul.f32 %v740, %v740
    %v757 = vmul.f32 %v741, %v741
    %v758 = vmul.f32 %v742, %v742
    %v759 = vmul.f32 %v743, %v743
    %v760 = vmul.f32 %v744, %v744
    %v761 = vmul.f32 %v745, %v745
    %v762 = vmul.f32 %v746, %v746
    %v763 = vmul.f32 %v747, %v747
    %v764 = vmul.f32 %v748, %v748
    %v765 = vmul.f32 %v749, %v749
    %v766 = vmul.f32 %v750, %v750
    %v767 = vmul.f32 %v751, %v751
    %v768 = vmul.f32 %v752, %v752
    %v769 = vmul.f32 %v753, %v753
    %v770 = vadd.f32 %v754, %v755
    %v771 = vadd.f32 %v770, %v756
    %v772 = vadd.f32 %v771, %v757
    %v773 = vadd.f32 %v772, %v758
    %v774 = vadd.f32 %v773, %v759
    %v775 = vadd.f32 %v774, %v760
    %v776 = vadd.f32 %v775, %v761
    %v777 = vadd.f32 %v776, %v762
    %v778 = vadd.f32 %v777, %v763
    %v779 = vadd.f32 %v778, %v764
    %v780 = vadd.f32 %v779, %v765
    %v781 = vadd.f32 %v780, %v766
    %v782 = vadd.f32 %v781, %v767
    %v783 = vadd.f32 %v782, %v768
    %v784 = vadd.f32 %v783, %v769
    %v785 = vrot.slane %v784, 4
    %v786 = vadd.f32 %v784, %v785
    %v787 = vrot.slane %v786, 2
    %v788 = vadd.f32 %v786, %v787
    %v789 = vrot.slane %v788, 1
    %v790 = vadd.f32 %v788, %v789
    %v791 = vmul.f32 %v790, %v236
    %v792 = vadd.f32 %v791, 1e-05
    %v793 = vrsqrt.pop %v792
    %v794 = vmul.f32 %v793, %v792
    %v795 = vmul.f32 %v794, %v793
    %v796 = vmul.f32 0.5, %v795
    %v797 = vsub.f32 1.5, %v796
    %v798 = vmul.f32 %v793, %v797
    %vm799 = vweird.f32 %v792
    %vm800 = vweird.f32 %v793
    %vm801 = vmor %vm799, %vm800
    %v802 = vsel %vm801, %v793, %v798
    %v803 = vmul.f32 %v738, %v802
    %v804 = vmul.f32 %v739, %v802
    %v805 = vmul.f32 %v740, %v802
    %v806 = vmul.f32 %v741, %v802
    %v807 = vmul.f32 %v742, %v802
    %v808 = vmul.f32 %v743, %v802
    %v809 = vmul.f32 %v744, %v802
    %v810 = vmul.f32 %v745, %v802
    %v811 = vmul.f32 %v746, %v802
    %v812 = vmul.f32 %v747, %v802
    %v813 = vmul.f32 %v748, %v802
    %v814 = vmul.f32 %v749, %v802
    %v815 = vmul.f32 %v750, %v802
    %v816 = vmul.f32 %v751, %v802
    %v817 = vmul.f32 %v752, %v802
    %v818 = vmul.f32 %v753, %v802
    %v819 = vperm.slane %v94, 4
    %v820 = vmul.f32 %v803, %v819
    %v821 = vmul.f32 %v804, %v819
    %v822 = vmul.f32 %v805, %v819
    %v823 = vmul.f32 %v806, %v819
    %v824 = vmul.f32 %v807, %v819
    %v825 = vmul.f32 %v808, %v819
    %v826 = vmul.f32 %v809, %v819
    %v827 = vmul.f32 %v810, %v819
    %v828 = vmul.f32 %v811, %v819
    %v829 = vmul.f32 %v812, %v819
    %v830 = vmul.f32 %v813, %v819
    %v831 = vmul.f32 %v814, %v819
    %v832 = vmul.f32 %v815, %v819
    %v833 = vmul.f32 %v816, %v819
    %v834 = vmul.f32 %v817, %v819
    %v835 = vmul.f32 %v818, %v819
    %v836 = vperm.slane %v94, 5
    %v837 = vadd.f32 %v820, %v836
    %v838 = vadd.f32 %v821, %v836
    %v839 = vadd.f32 %v822, %v836
    %v840 = vadd.f32 %v823, %v836
    %v841 = vadd.f32 %v824, %v836
    %v842 = vadd.f32 %v825, %v836
    %v843 = vadd.f32 %v826, %v836
    %v844 = vadd.f32 %v827, %v836
    %v845 = vadd.f32 %v828, %v836
    %v846 = vadd.f32 %v829, %v836
    %v847 = vadd.f32 %v830, %v836
    %v848 = vadd.f32 %v831, %v836
    %v849 = vadd.f32 %v832, %v836
    %v850 = vadd.f32 %v833, %v836
    %v851 = vadd.f32 %v834, %v836
    %v852 = vadd.f32 %v835, %v836
    %vm853 = vcmp.gt.f32.partialorder %v837, 0.0
    %vm854 = vcmp.gt.f32.partialorder %v838, 0.0
    %vm855 = vcmp.gt.f32.partialorder %v839, 0.0
    %vm856 = vcmp.gt.f32.partialorder %v840, 0.0
    %vm857 = vcmp.gt.f32.partialorder %v841, 0.0
    %vm858 = vcmp.gt.f32.partialorder %v842, 0.0
    %vm859 = vcmp.gt.f32.partialorder %v843, 0.0
    %vm860 = vcmp.gt.f32.partialorder %v844, 0.0
    %vm861 = vcmp.gt.f32.partialorder %v845, 0.0
    %vm862 = vcmp.gt.f32.partialorder %v846, 0.0
    %vm863 = vcmp.gt.f32.partialorder %v847, 0.0
    %vm864 = vcmp.gt.f32.partialorder %v848, 0.0
    %vm865 = vcmp.gt.f32.partialorder %v849, 0.0
    %vm866 = vcmp.gt.f32.partialorder %v850, 0.0
    %vm867 = vcmp.gt.f32.partialorder %v851, 0.0
    %vm868 = vcmp.gt.f32.partialorder %v852, 0.0
    %v869 = vmul.f32 %v837, 0.01
    %v870 = vmul.f32 %v838, 0.01
    %v871 = vmul.f32 %v839, 0.01
    %v872 = vmul.f32 %v840, 0.01
    %v873 = vmul.f32 %v841, 0.01
    %v874 = vmul.f32 %v842, 0.01
    %v875 = vmul.f32 %v843, 0.01
    %v876 = vmul.f32 %v844, 0.01
    %v877 = vmul.f32 %v845, 0.01
    %v878 = vmul.f32 %v846, 0.01
    %v879 = vmul.f32 %v847, 0.01
    %v880 = vmul.f32 %v848, 0.01
    %v881 = vmul.f32 %v849, 0.01
    %v882 = vmul.f32 %v850, 0.01
    %v883 = vmul.f32 %v851, 0.01
    %v884 = vmul.f32 %v852, 0.01
    %v885 = vsel %vm853, %v837, %v869
    %v886 = vsel %vm854, %v838, %v870
    %v887 = vsel %vm855, %v839, %v871
    %v888 = vsel %vm856, %v840, %v872
    %v889 = vsel %vm857, %v841, %v873
    %v890 = vsel %vm858, %v842, %v874
    %v891 = vsel %vm859, %v843, %v875
    %v892 = vsel %vm860, %v844, %v876
    %v893 = vsel %vm861, %v845, %v877
    %v894 = vsel %vm862, %v846, %v878
    %v895 = vsel %vm863, %v847, %v879
    %v896 = vsel %vm864, %v848, %v880
    %v897 = vsel %vm865, %v849, %v881
    %v898 = vsel %vm866, %v850, %v882
    %v899 = vsel %vm867, %v851, %v883
    %v900 = vsel %vm868, %v852, %v884
    %v901 = vperm.slane %v94, 6
    %902 = vmatpush.msra.mxu0 %v93
    %903 = vmatpush.msra.mxu0 %v92
    %904 = vmatpush.msra.mxu0 %v91
    %905 = vmatpush.msra.mxu0 %v90
    %906 = vmatpush.msra.mxu0 %v89
    %907 = vmatpush.msra.mxu0 %v88
    %908 = vmatpush.msra.mxu0 %v87
    %909 = vmatpush.msra.mxu0 %v86
    %910 = vmatpush.msra.mxu0 %v85
    %911 = vmatpush.msra.mxu0 %v84
    %912 = vmatpush.msra.mxu0 %v83
    %913 = vmatpush.msra.mxu0 %v82
    %914 = vmatpush.msra.mxu0 %v81
    %915 = vmatpush.msra.mxu0 %v80
    %916 = vmatpush.msra.mxu0 %v79
    %917 = vmatpush.msra.mxu0 %v78
    %918 = vmatmul.f32.gmra.mxu0 %v885
    %v919 = vpop.f32.mrf.mxu0
    %v920 = vadd.f32 %v901, %v919
    %921 = vmatmul.f32.gmra.mxu0 %v886
    %v922 = vpop.f32.mrf.mxu0
    %v923 = vadd.f32 %v901, %v922
    %924 = vmatmul.f32.gmra.mxu0 %v887
    %v925 = vpop.f32.mrf.mxu0
    %v926 = vadd.f32 %v901, %v925
    %927 = vmatmul.f32.gmra.mxu0 %v888
    %v928 = vpop.f32.mrf.mxu0
    %v929 = vadd.f32 %v901, %v928
    %930 = vmatmul.f32.gmra.mxu0 %v889
    %v931 = vpop.f32.mrf.mxu0
    %v932 = vadd.f32 %v901, %v931
    %933 = vmatmul.f32.gmra.mxu0 %v890
    %v934 = vpop.f32.mrf.mxu0
    %v935 = vadd.f32 %v901, %v934
    %936 = vmatmul.f32.gmra.mxu0 %v891
    %v937 = vpop.f32.mrf.mxu0
    %v938 = vadd.f32 %v901, %v937
    %939 = vmatmul.f32.gmra.mxu0 %v892
    %v940 = vpop.f32.mrf.mxu0
    %v941 = vadd.f32 %v901, %v940
    %942 = vmatmul.f32.gmra.mxu0 %v893
    %v943 = vpop.f32.mrf.mxu0
    %v944 = vadd.f32 %v901, %v943
    %945 = vmatmul.f32.gmra.mxu0 %v894
    %v946 = vpop.f32.mrf.mxu0
    %v947 = vadd.f32 %v901, %v946
    %948 = vmatmul.f32.gmra.mxu0 %v895
    %v949 = vpop.f32.mrf.mxu0
    %v950 = vadd.f32 %v901, %v949
    %951 = vmatmul.f32.gmra.mxu0 %v896
    %v952 = vpop.f32.mrf.mxu0
    %v953 = vadd.f32 %v901, %v952
    %954 = vmatmul.f32.gmra.mxu0 %v897
    %v955 = vpop.f32.mrf.mxu0
    %v956 = vadd.f32 %v901, %v955
    %957 = vmatmul.f32.gmra.mxu0 %v898
    %v958 = vpop.f32.mrf.mxu0
    %v959 = vadd.f32 %v901, %v958
    %960 = vmatmul.f32.gmra.mxu0 %v899
    %v961 = vpop.f32.mrf.mxu0
    %v962 = vadd.f32 %v901, %v961
    %963 = vmatmul.f32.gmra.mxu0 %v900
    %v964 = vpop.f32.mrf.mxu0
    %v965 = vadd.f32 %v901, %v964
    %966 = vdwg.mxu0
    %967 = vst [vmem:[#allocation5] sm:$0xff] %v920
    %968 = vst [vmem:[#allocation5 + $0x8] sm:$0xff] %v923
    %969 = vst [vmem:[#allocation5 + $0x10] sm:$0xff] %v926
    %970 = vst [vmem:[#allocation5 + $0x18] sm:$0xff] %v929
    %971 = vst [vmem:[#allocation5 + $0x20] sm:$0xff] %v932
    %972 = vst [vmem:[#allocation5 + $0x28] sm:$0xff] %v935
    %973 = vst [vmem:[#allocation5 + $0x30] sm:$0xff] %v938
    %974 = vst [vmem:[#allocation5 + $0x38] sm:$0xff] %v941
    %975 = vst [vmem:[#allocation5 + $0x40] sm:$0xff] %v944
    %976 = vst [vmem:[#allocation5 + $0x48] sm:$0xff] %v947
    %977 = vst [vmem:[#allocation5 + $0x50] sm:$0xff] %v950
    %978 = vst [vmem:[#allocation5 + $0x58] sm:$0xff] %v953
    %979 = vst [vmem:[#allocation5 + $0x60] sm:$0xff] %v956
    %980 = vst [vmem:[#allocation5 + $0x68] sm:$0xff] %v959
    %981 = vst [vmem:[#allocation5 + $0x70] sm:$0xff] %v962
    %982 = vst [vmem:[#allocation5 + $0x78] sm:$0xff] %v965
    // Predicated region
    $region14: #{tpu_custom_call.1} parent=1 // pred_check
      _
    $region15: #{tpu_custom_call.1} parent=1 // pred_check_branch
      %984 = sbr.rel (0) target = $region17
    $region16: #{tpu_custom_call.1} parent=1 // pred_region
      %986 = vsyncadd [#allocation4], 0
      %s987 = sshll.u32 [#allocation5], 4
      %s988 = int_to_ptr.vmem [resolvable:$true] %s987
      %s989 = sshll.u32 %s2, 4
      %s990 = int_to_ptr.hbm [resolvable:$true] %s989
      %995 = dma.vmem_to_hbm [thread:$0]  %s988, 2048, %s990, [#allocation4], 128, 128, 8
    $region17: #{tpu_custom_call.1} parent=1 // pred_fallthru
      _
    // Predicated region
    $region18: #{tpu_custom_call.1} parent=1 // pred_check
      _
    $region19: #{tpu_custom_call.1} parent=1 // pred_check_branch
      %997 = sbr.rel (0) target = $region21
    $region20: #{tpu_custom_call.1} parent=1 // pred_region
      %999 = dma.done [#allocation4], 2048
    $region21: #{tpu_custom_call.1} parent=1 // pred_fallthru
      _
    %1000 = vsyncpa [#allocation3], 1
    %1001 = vsyncpa [#allocation4], 1

</llo_original>
